<compile_context>
chip_gen: v6e
topology: v6e:2x2x1
jax: 0.10.0
libtpu: 0.0.40
codegen_flags: <defaults>
</compile_context>

<pallas_src>
import functools

import jax
import jax.numpy as jnp
from jax.experimental import pallas as pl
from jax.experimental.pallas import tpu as pltpu

_LANES = 128
_SMOOTH = 1e-5
_MAX_BLOCK_ROWS = 4096      # 4096 x 128 x 4 B = 2 MiB per f32 input block


def _dice_sums_kernel(s_ref, t_ref, out_ref, *, apply_sigmoid, rows_valid,
                      tile_rows, needs_row_mask):
    """Accumulate per-group (8,128) partials of sum(s*t), sum(t*t), sum(s*s).

    Grid: (G, A, T).  Block views: s_ref / t_ref are (1,1,tile_rows,128) in the
    source dtype; out_ref is (1,3,8,128) f32 and resident across the A and T
    (reduction) axes, acting as the accumulator.
    """
    a_idx = pl.program_id(1)
    t_idx = pl.program_id(2)

    @pl.when(jnp.logical_and(a_idx == 0, t_idx == 0))
    def _():
        out_ref[...] = jnp.zeros_like(out_ref)

    n_full = tile_rows // 8          # full (8,128) chunks per tile (>= 1)
    rem = tile_rows - n_full * 8     # non-zero only on single-tile grids

    def chunk(row0, lo, hi):
        """(8,128) partial products for rows [row0, row0+8) of this tile.

        lo / hi are optional *global* row bounds; rows outside [lo, hi) are
        zeroed (hi: ragged last row tile, lo: overlap of the tail window)."""
        s = s_ref[0, 0, pl.ds(row0, 8), :].astype(jnp.float32)
        t = t_ref[0, 0, pl.ds(row0, 8), :].astype(jnp.float32)
        valid = None
        if (lo is not None) or (hi is not None):
            gr = (t_idx * tile_rows + row0
                  + jax.lax.broadcasted_iota(jnp.int32, (8, 1), 0))
            if hi is not None:
                valid = gr < hi
            if lo is not None:
                v_lo = gr >= lo
                valid = v_lo if valid is None else jnp.logical_and(valid, v_lo)
            t = jnp.where(valid, t, 0.0)
        if apply_sigmoid:
            # sigmoid(x) == 0.5*tanh(0.5*x) + 0.5: keeps the transcendental on
            # the EUP slot; the -1e4 lane-pad sentinel still maps to exactly 0.
            s = 0.5 * jnp.tanh(0.5 * s) + 0.5
        if valid is not None:
            s = jnp.where(valid, s, 0.0)
        return s * t, t * t, s * s

    def accumulate(hi):
        zero8 = jnp.zeros((8, _LANES), jnp.float32)

        def body(k, carry):
            ci, cy, cz = carry
            di, dy, dz = chunk(pl.multiple_of(k * 8, 8), None, hi)
            return ci + di, cy + dy, cz + dz

        ci, cy, cz = jax.lax.fori_loop(0, n_full, body, (zero8, zero8, zero8),
                                       unroll=min(8, n_full))
        if rem:
            # Overlapping 8-row tail window [tile_rows-8, tile_rows); rows
            # already covered by the chunk loop are masked out via `lo`.
            di, dy, dz = chunk(tile_rows - 8,
                               t_idx * tile_rows + n_full * 8, hi)
            ci, cy, cz = ci + di, cy + dy, cz + dz
        # Single accumulator read-modify-write per grid step (not per vreg).
        out_ref[0, 0] += ci
        out_ref[0, 1] += cy
        out_ref[0, 2] += cz

    if needs_row_mask:
        last = pl.num_programs(2) - 1

        @pl.when(t_idx < last)
        def _():
            accumulate(hi=None)          # aligned fast path: no mask ops

        @pl.when(t_idx == last)
        def _():
            accumulate(hi=rows_valid)    # ragged last row tile only
    else:
        accumulate(hi=None)


def _dice_group_sums(score4, target4, *, apply_sigmoid, max_block_rows):
    """score4/target4: (A, G, R, 128).  Returns (G, 3) f32:
    (sum s*t, sum t*t, sum s*s) over all A*R*128 elements of each group g."""
    A, G, R, L = score4.shape
    assert L == _LANES and target4.shape == score4.shape
    assert R >= 8, "callers pad the flattened axis so each group has >= 8 rows"

    bytes_per_row = _LANES * (score4.dtype.itemsize + target4.dtype.itemsize)
    # Cap the row tile so 2 inputs x 2 pipeline buffers stay ~<= 12 MiB of VMEM
    # (safe under v5e's 16 MiB scoped default; plenty of room on v6e / v7x).
    cap_rows = max(8, (((12 << 20) // (2 * bytes_per_row)) // 8) * 8)
    max_rows = max(8, min(int(max_block_rows), cap_rows))
    tile_rows = R if R <= max_rows else (max_rows // 8) * 8
    num_tiles = pl.cdiv(R, tile_rows)
    needs_row_mask = (R % tile_rows) != 0
    vmem_limit = int(min(64 << 20,
                         max(16 << 20,
                             2 * tile_rows * bytes_per_row + (2 << 20))))

    kernel = functools.partial(
        _dice_sums_kernel, apply_sigmoid=apply_sigmoid, rows_valid=R,
        tile_rows=tile_rows, needs_row_mask=needs_row_mask)

    out = pl.pallas_call(
        kernel,
        out_shape=jax.ShapeDtypeStruct((G, 3, 8, _LANES), jnp.float32),
        grid_spec=pltpu.PrefetchScalarGridSpec(
            num_scalar_prefetch=0,
            grid=(G, A, num_tiles),
            in_specs=[
                pl.BlockSpec((1, 1, tile_rows, _LANES),
                             lambda g, a, t: (a, g, t, 0)),
                pl.BlockSpec((1, 1, tile_rows, _LANES),
                             lambda g, a, t: (a, g, t, 0)),
            ],
            out_specs=pl.BlockSpec((1, 3, 8, _LANES),
                                   lambda g, a, t: (g, 0, 0, 0)),
        ),
        compiler_params=pltpu.CompilerParams(
            dimension_semantics=("parallel", "arbitrary", "arbitrary"),
            vmem_limit_bytes=vmem_limit),
    )(score4, target4)                                   # (G, 3, 8, 128)

    # Tiny cross-lane reduction (12 vregs per group) finishes in glue JAX.
    return out.sum(axis=(2, 3))                          # (G, 3)


def _dice_from_sums(sums):
    intersect, y_sum, z_sum = sums[:, 0], sums[:, 1], sums[:, 2]
    return 1.0 - (2.0 * intersect + _SMOOTH) / (z_sum + y_sum + _SMOOTH)


def per_class_dice(score_cm, target_cm, apply_sigmoid=False,
                   max_block_rows=_MAX_BLOCK_ROWS):
    """score_cm, target_cm: (C, M) class-major flattened (any float dtype).

    Returns (C,) float32 per-class dice losses (torch `_dice_loss` per class).
    """
    C, M = score_cm.shape
    assert target_cm.shape == (C, M)

    # For C == 1, split the single class's rows into two groups for the
    # 'parallel' grid axis (keeps both v7x TensorCores busy; ~free on 1-TC
    # chips) -- but only when the split does not force an extra pad copy.
    splits = 1
    if C == 1:
        rows = pl.cdiv(M, _LANES)
        if rows >= 16 and (M % _LANES != 0 or rows % 2 == 0):
            splits = 2

    # Pad the flattened axis only as much as required: lane multiple (x splits
    # for the even group split) and at least 8 rows per group.  Padded targets
    # are 0; padded logits use -1e4 so the fused sigmoid maps them to exactly
    # 0, so padding contributes nothing to any of the three sums.
    align = _LANES * splits
    padded_len = max(pl.cdiv(M, align) * align, splits * 8 * _LANES)
    pad = padded_len - M
    if pad:
        s_fill = -1e4 if apply_sigmoid else 0.0
        score_cm = jnp.pad(score_cm, ((0, 0), (0, pad)), constant_values=s_fill)
        target_cm = jnp.pad(target_cm, ((0, 0), (0, pad)), constant_values=0.0)

    G = C * splits
    Rg = padded_len // align
    score4 = score_cm.reshape(1, G, Rg, _LANES)      # free metadata reshape
    target4 = target_cm.reshape(1, G, Rg, _LANES)

    sums = _dice_group_sums(score4, target4, apply_sigmoid=apply_sigmoid,
                            max_block_rows=max_block_rows)       # (G, 3)
    sums = sums.reshape(C, splits, 3).sum(axis=1)                # (C, 3)
    return _dice_from_sums(sums)


def per_class_dice_nchw(score, target, max_block_rows=_MAX_BLOCK_ROWS):
    """score, target: (N, C, *spatial).  Per-class dice over all N*spatial
    elements.  No transposition copy: the kernel grid walks (class, batch)."""
    assert score.shape == target.shape and score.ndim >= 3
    N, C = score.shape[:2]
    hw = 1
    for d in score.shape[2:]:
        hw *= d
    sc = score.reshape(N, C, hw)
    tg = target.reshape(N, C, hw)
    padded = max(pl.cdiv(hw, _LANES) * _LANES, 8 * _LANES)
    pad = padded - hw
    if pad:
        # Zero padding contributes 0 to every sum (no fused sigmoid here).
        sc = jnp.pad(sc, ((0, 0), (0, 0), (0, pad)))
        tg = jnp.pad(tg, ((0, 0), (0, 0), (0, pad)))
    R = padded // _LANES
    sc4 = sc.reshape(N, C, R, _LANES)                # free metadata reshape
    tg4 = tg.reshape(N, C, R, _LANES)
    sums = _dice_group_sums(sc4, tg4, apply_sigmoid=False,
                            max_block_rows=max_block_rows)       # (C, 3)
    return _dice_from_sums(sums)


def dice_loss_forward(inputs, target, n_classes, softmax=False, sigmoid=False,
                      weight=None):
    """Faithful port of DiceLoss.forward (returns the scalar loss)."""
    fuse_sigmoid = False
    if n_classes == 1:
        inputs = inputs[:, None, ...]          # unsqueeze(dim=1)
        if sigmoid:
            fuse_sigmoid = True                # sigmoid fused into the kernel
    elif softmax:
        # channel softmax couples classes at each pixel -> stays in glue JAX
        inputs = jax.nn.softmax(inputs, axis=1)
    target = target[:, None, ...]              # unsqueeze(dim=1)
    if weight is None:
        weight = [1.0] * n_classes
    assert len(weight) == n_classes, 'weight length must equal n_classes'
    assert inputs.shape == target.shape, (
        'predict {} & target {} shape do not match'.format(inputs.shape,
                                                           target.shape))

    if n_classes == 1:
        # Free metadata reshape (no moveaxis copy); source dtype is preserved
        # so bf16 inputs are read from HBM as-is and cast per chunk in-kernel.
        sc = inputs.reshape(1, -1)
        tg = target.reshape(1, -1)
        dice = per_class_dice(sc, tg, apply_sigmoid=fuse_sigmoid)
    else:
        if inputs.shape[1] != n_classes:       # torch loops only n_classes chans
            inputs = inputs[:, :n_classes]
            target = target[:, :n_classes]
        dice = per_class_dice_nchw(inputs, target)

    # TODO(synk): the reference also builds class_wise_dice via dice.item()
    # (host sync, never returned) -- intentionally dropped.
    w = jnp.asarray(weight, jnp.float32)
    loss = jnp.sum(dice * w) / n_classes
    return loss


def _ref_dice(s, t):
    i = jnp.sum(s * t)
    y = jnp.sum(t * t)
    z = jnp.sum(s * s)
    return 1.0 - (2.0 * i + _SMOOTH) / (z + y + _SMOOTH)


if __name__ == "__main__":
    key = jax.random.PRNGKey(0)
    k1, k2, k3, k4, k5, k6, k7, k8 = jax.random.split(key, 8)

    # Case 1: the self-consistent reference path, n_classes == 1 with sigmoid,
    # through the full forward().
    logits = jax.random.normal(k1, (2, 16, 16), jnp.float32)
    target1 = (jax.random.uniform(k2, (2, 16, 16)) > 0.5).astype(jnp.float32)
    loss1 = jax.block_until_ready(
        dice_loss_forward(logits, target1, n_classes=1, sigmoid=True))
    ref1 = _ref_dice(jax.nn.sigmoid(logits), target1)   # weight [1], / 1
    assert abs(float(loss1) - float(ref1)) < 1e-4, (float(loss1), float(ref1))

    # Case 2: multi-class (N, C, H, W) path, C = 4, no moveaxis copy: softmaxed
    # predictions vs one-hot targets; exercises the (class, batch) grid walk.
    probs = jax.nn.softmax(jax.random.normal(k3, (2, 4, 16, 16), jnp.float32),
                           axis=1)
    lbl = jax.random.randint(k4, (2, 16, 16), 0, 4)
    onehot = jax.nn.one_hot(lbl, 4, axis=1, dtype=jnp.float32)  # (2,4,16,16)
    dice_mc = jax.block_until_ready(per_class_dice_nchw(probs, onehot))
    ref_mc = jnp.stack([_ref_dice(probs[:, i], onehot[:, i]) for i in range(4)])
    assert jnp.allclose(dice_mc, ref_mc, atol=1e-5), (dice_mc, ref_mc)

    # Case 3: ragged single-class bf16 path with a small tile override:
    # multi-tile accumulator pipeline, lane-pad sigmoid sentinel, masked last
    # row tile, and the 2-way 'parallel' group split.
    M3 = 33 * 128 + 50                                   # 4274, not lane-aligned
    score_r = jax.random.normal(k5, (1, M3), jnp.float32).astype(jnp.bfloat16)
    target_r = (jax.random.uniform(k6, (1, M3)) > 0.5).astype(jnp.float32)
    dice_r = jax.block_until_ready(
        per_class_dice(score_r, target_r, apply_sigmoid=True, max_block_rows=16))
    ref_r = _ref_dice(jax.nn.sigmoid(score_r.astype(jnp.float32))[0], target_r[0])
    assert abs(float(dice_r[0]) - float(ref_r)) < 1e-4, (float(dice_r[0]),
                                                         float(ref_r))

    # Case 4: single-tile, non-multiple-of-8 row count (overlapping tail-window
    # remainder path), no sigmoid, no padding.
    M4 = 13 * 128
    score_s = jax.random.normal(k7, (1, M4), jnp.float32)
    target_s = (jax.random.uniform(k8, (1, M4)) > 0.5).astype(jnp.float32)
    dice_s = jax.block_until_ready(per_class_dice(score_s, target_s))
    ref_s = _ref_dice(score_s[0], target_s[0])
    assert abs(float(dice_s[0]) - float(ref_s)) < 1e-5, (float(dice_s[0]),
                                                         float(ref_s))

    print("KERNEL_OK")
</pallas_src>

<mosaic_0001>
module attributes {stable_mosaic.version = 11 : i64} {
  func.func @_dice_sums_kernel(%arg0: i32, %arg1: i32, %arg2: i32, %arg3: memref<1x1x8x128xf32, #tpu.memory_space<vmem>>, %arg4: memref<1x1x8x128xf32, #tpu.memory_space<vmem>>, %arg5: memref<1x3x8x128xf32, #tpu.memory_space<vmem>>) attributes {dimension_semantics = [#tpu.dimension_semantics<parallel>, #tpu.dimension_semantics<arbitrary>, #tpu.dimension_semantics<arbitrary>], iteration_bounds = array<i64: 1, 1, 1>, scalar_prefetch = 0 : i64, scratch_operands = 0 : i64, tpu.core_type = #tpu.core_type<tc>, window_params = [{transform_indices = @transform_0, window_bounds = array<i64: 1, 1, 8, 128>}, {transform_indices = @transform_1, window_bounds = array<i64: 1, 1, 8, 128>}, {transform_indices = @transform_2, window_bounds = array<i64: 1, 3, 8, 128>}]} {
    %c0_i32 = arith.constant 0 : i32
    %0 = arith.cmpi eq, %arg1, %c0_i32 : i32
    %c0_i32_0 = arith.constant 0 : i32
    %1 = arith.cmpi eq, %arg2, %c0_i32_0 : i32
    %2 = arith.andi %0, %1 : i1
    %3 = arith.extui %2 : i1 to i32
    %c0_i32_1 = arith.constant 0 : i32
    %4 = arith.cmpi ne, %3, %c0_i32_1 : i32
    scf.if %4 {
      %cst_33 = arith.constant 0.000000e+00 : f32
      %45 = vector.broadcast %cst_33 : f32 to vector<1x3x8x128xf32>
      %c0_34 = arith.constant 0 : index
      %c0_35 = arith.constant 0 : index
      %c0_36 = arith.constant 0 : index
      %c0_37 = arith.constant 0 : index
      %46 = vector.load %arg5[%c0_34, %c0_35, %c0_36, %c0_37] : memref<1x3x8x128xf32, #tpu.memory_space<vmem>>, vector<1x3x8x128xf32>
      tpu.vector_store %arg5[%c0_34, %c0_35, %c0_36, %c0_37], %45 {strides = array<i32>} : memref<1x3x8x128xf32, #tpu.memory_space<vmem>>, vector<1x3x8x128xf32>,
    } else {
    }
    %cst = arith.constant 0.000000e+00 : f32
    %5 = vector.broadcast %cst : f32 to vector<8x128xf32>
    %c0_i32_2 = arith.constant 0 : i32
    %c8_i32 = arith.constant 8 : i32
    %6 = arith.muli %c0_i32_2, %c8_i32 : i32
    %7 = tpu.assume_multiple %6, 8 : i32
    %c0 = arith.constant 0 : index
    %c0_3 = arith.constant 0 : index
    %8 = arith.index_cast %7 : i32 to index
    %c0_4 = arith.constant 0 : index
    %9 = vector.load %arg3[%c0, %c0_3, %8, %c0_4] : memref<1x1x8x128xf32, #tpu.memory_space<vmem>>, vector<1x1x8x128xf32>
    %10 = vector.shape_cast %9 : vector<1x1x8x128xf32> to vector<8x128xf32>
    %c0_5 = arith.constant 0 : index
    %c0_6 = arith.constant 0 : index
    %11 = arith.index_cast %7 : i32 to index
    %c0_7 = arith.constant 0 : index
    %12 = vector.load %arg4[%c0_5, %c0_6, %11, %c0_7] : memref<1x1x8x128xf32, #tpu.memory_space<vmem>>, vector<1x1x8x128xf32>
    %13 = vector.shape_cast %12 : vector<1x1x8x128xf32> to vector<8x128xf32>
    %cst_8 = arith.constant 5.000000e-01 : f32
    %14 = vector.broadcast %cst_8 : f32 to vector<8x128xf32>
    %15 = arith.mulf %14, %10 : vector<8x128xf32>
    %16 = math.tanh %15 : vector<8x128xf32>
    %cst_9 = arith.constant 5.000000e-01 : f32
    %17 = vector.broadcast %cst_9 : f32 to vector<8x128xf32>
    %18 = arith.mulf %17, %16 : vector<8x128xf32>
    %cst_10 = arith.constant 5.000000e-01 : f32
    %19 = vector.broadcast %cst_10 : f32 to vector<8x128xf32>
    %20 = arith.addf %18, %19 : vector<8x128xf32>
    %21 = arith.mulf %20, %13 : vector<8x128xf32>
    %22 = arith.mulf %13, %13 : vector<8x128xf32>
    %23 = arith.mulf %20, %20 : vector<8x128xf32>
    %24 = arith.addf %5, %21 : vector<8x128xf32>
    %25 = arith.addf %5, %22 : vector<8x128xf32>
    %26 = arith.addf %5, %23 : vector<8x128xf32>
    %c1_i32 = arith.constant 1 : i32
    %c0_11 = arith.constant 0 : index
    %c0_12 = arith.constant 0 : index
    %c0_13 = arith.constant 0 : index
    %c0_14 = arith.constant 0 : index
    %27 = vector.load %arg5[%c0_11, %c0_12, %c0_13, %c0_14] : memref<1x3x8x128xf32, #tpu.memory_space<vmem>>, vector<1x1x8x128xf32>
    %28 = vector.shape_cast %27 : vector<1x1x8x128xf32> to vector<8x128xf32>
    %29 = arith.addf %28, %24 : vector<8x128xf32>
    %c0_15 = arith.constant 0 : index
    %c0_16 = arith.constant 0 : index
    %c0_17 = arith.constant 0 : index
    %c0_18 = arith.constant 0 : index
    %30 = vector.load %arg5[%c0_15, %c0_16, %c0_17, %c0_18] : memref<1x3x8x128xf32, #tpu.memory_space<vmem>>, vector<1x1x8x128xf32>
    %31 = vector.shape_cast %30 : vector<1x1x8x128xf32> to vector<8x128xf32>
    %32 = vector.shape_cast %29 : vector<8x128xf32> to vector<1x1x8x128xf32>
    tpu.vector_store %arg5[%c0_15, %c0_16, %c0_17, %c0_18], %32 {strides = array<i32>} : memref<1x3x8x128xf32, #tpu.memory_space<vmem>>, vector<1x1x8x128xf32>,
    %c0_19 = arith.constant 0 : index
    %c1 = arith.constant 1 : index
    %c0_20 = arith.constant 0 : index
    %c0_21 = arith.constant 0 : index
    %33 = vector.load %arg5[%c0_19, %c1, %c0_20, %c0_21] : memref<1x3x8x128xf32, #tpu.memory_space<vmem>>, vector<1x1x8x128xf32>
    %34 = vector.shape_cast %33 : vector<1x1x8x128xf32> to vector<8x128xf32>
    %35 = arith.addf %34, %25 : vector<8x128xf32>
    %c0_22 = arith.constant 0 : index
    %c1_23 = arith.constant 1 : index
    %c0_24 = arith.constant 0 : index
    %c0_25 = arith.constant 0 : index
    %36 = vector.load %arg5[%c0_22, %c1_23, %c0_24, %c0_25] : memref<1x3x8x128xf32, #tpu.memory_space<vmem>>, vector<1x1x8x128xf32>
    %37 = vector.shape_cast %36 : vector<1x1x8x128xf32> to vector<8x128xf32>
    %38 = vector.shape_cast %35 : vector<8x128xf32> to vector<1x1x8x128xf32>
    tpu.vector_store %arg5[%c0_22, %c1_23, %c0_24, %c0_25], %38 {strides = array<i32>} : memref<1x3x8x128xf32, #tpu.memory_space<vmem>>, vector<1x1x8x128xf32>,
    %c0_26 = arith.constant 0 : index
    %c2 = arith.constant 2 : index
    %c0_27 = arith.constant 0 : index
    %c0_28 = arith.constant 0 : index
    %39 = vector.load %arg5[%c0_26, %c2, %c0_27, %c0_28] : memref<1x3x8x128xf32, #tpu.memory_space<vmem>>, vector<1x1x8x128xf32>
    %40 = vector.shape_cast %39 : vector<1x1x8x128xf32> to vector<8x128xf32>
    %41 = arith.addf %40, %26 : vector<8x128xf32>
    %c0_29 = arith.constant 0 : index
    %c2_30 = arith.constant 2 : index
    %c0_31 = arith.constant 0 : index
    %c0_32 = arith.constant 0 : index
    %42 = vector.load %arg5[%c0_29, %c2_30, %c0_31, %c0_32] : memref<1x3x8x128xf32, #tpu.memory_space<vmem>>, vector<1x1x8x128xf32>
    %43 = vector.shape_cast %42 : vector<1x1x8x128xf32> to vector<8x128xf32>
    %44 = vector.shape_cast %41 : vector<8x128xf32> to vector<1x1x8x128xf32>
    tpu.vector_store %arg5[%c0_29, %c2_30, %c0_31, %c0_32], %44 {strides = array<i32>} : memref<1x3x8x128xf32, #tpu.memory_space<vmem>>, vector<1x1x8x128xf32>,
    return
  }
  func.func @transform_0(%arg0: i32, %arg1: i32, %arg2: i32) -> (i32, i32, i32, i32) {
    %c0_i32 = arith.constant 0 : i32
    %c0_i32_0 = arith.constant 0 : i32
    return %arg1, %arg0, %arg2, %c0_i32 : i32, i32, i32, i32
  }
  func.func @transform_1(%arg0: i32, %arg1: i32, %arg2: i32) -> (i32, i32, i32, i32) {
    %c0_i32 = arith.constant 0 : i32
    %c0_i32_0 = arith.constant 0 : i32
    return %arg1, %arg0, %arg2, %c0_i32 : i32, i32, i32, i32
  }
  func.func @transform_2(%arg0: i32, %arg1: i32, %arg2: i32) -> (i32, i32, i32, i32) {
    %c0_i32 = arith.constant 0 : i32
    %c0_i32_0 = arith.constant 0 : i32
    %c0_i32_1 = arith.constant 0 : i32
    %c0_i32_2 = arith.constant 0 : i32
    return %arg0, %c0_i32, %c0_i32_0, %c0_i32_1 : i32, i32, i32, i32
  }
}

</mosaic_0001>

<llo_original>
// kernel: tpu_custom_call.1
$region0: #{tpu_custom_call.1}
  #allocation0 [shape = 'u32[]', space=smem, size = 0x4, offset = 0x4, fixed_abs, tag = 'smem constant byte address 0x4 - core index']
  #allocation1 [shape = 'u32[144,128]{1,0:T(1,128)}', space=vmem, size = 0x12000, scoped, tag = 'internal scratch']
  %s0 = inlined_call_operand.hbm [shape: f32[1,1,8,128], index: 0, kind: input, shape index: {}]
  %s1 = inlined_call_operand.hbm [shape: f32[1,1,8,128], index: 1, kind: input, shape index: {}]
  %s2 = inlined_call_operand.hbm [shape: f32[1,3,8,128], index: 2, kind: output, shape index: {}]
  %s3 = sld [smem:[#allocation0]]
  $region30: #{tpu_custom_call.1} parent=0
    _
  %s5 = ssub.s32 1, %s3
  %s6 = scalar_select 0, %s5, %s3
  $region1: #{tpu_custom_call.1} parent=0
    #allocation2 [shape = 'u8[4096]{0}', space=vmem, size = 0x1000, scoped, tag = 'input window, operand 0, single buffered']
    #allocation3 [shape = 's32[1]{0}', space=sflag, size = 0x4, scoped, tag = 'scoped memory for tpu_custom_call.1']
    #allocation4 [shape = 's32[1]{0}', space=sflag, size = 0x4, scoped, tag = 'scoped memory for tpu_custom_call.1']
    #allocation5 [shape = 'u8[4096]{0}', space=vmem, size = 0x1000, scoped, tag = 'input window, operand 1, single buffered']
    #allocation6 [shape = 's32[1]{0}', space=sflag, size = 0x4, scoped, tag = 'scoped memory for tpu_custom_call.1']
    #allocation7 [shape = 'u8[12288]{0}', space=vmem, size = 0x3000, scoped, tag = 'output window, operand 0, single buffered']
    %7 = vsyncpa [#allocation3], 0
    %8 = vsyncpa [#allocation6], 0
    %9 = vsyncpa [#allocation4], 0
    // Predicated region
    $region2: #{tpu_custom_call.1} parent=1 // pred_check
      _
    $region3: #{tpu_custom_call.1} parent=1 // pred_check_branch
      %11 = sbr.rel (0) target = $region5
    $region4: #{tpu_custom_call.1} parent=1 // pred_region
      %s13 = ssub.s32 128, 128
      %14 = vsyncadd [#allocation3], %s13
      %s16 = sshll.u32 [#allocation2], 4
      %s17 = int_to_ptr.vmem [resolvable:$true] %s16
      %19 = dma.hbm_to_vmem [thread:$0]  %s0, 128, %s17, [#allocation3]
    $region5: #{tpu_custom_call.1} parent=1 // pred_fallthru
      _
    // Predicated region
    $region6: #{tpu_custom_call.1} parent=1 // pred_check
      _
    $region7: #{tpu_custom_call.1} parent=1 // pred_check_branch
      %21 = sbr.rel (0) target = $region9
    $region8: #{tpu_custom_call.1} parent=1 // pred_region
      %s23 = ssub.s32 128, 128
      %24 = vsyncadd [#allocation6], %s23
      %s26 = sshll.u32 [#allocation5], 4
      %s27 = int_to_ptr.vmem [resolvable:$true] %s26
      %29 = dma.hbm_to_vmem [thread:$0]  %s1, 128, %s27, [#allocation6]
    $region9: #{tpu_custom_call.1} parent=1 // pred_fallthru
      _
    // Predicated region
    $region10: #{tpu_custom_call.1} parent=1 // pred_check
      _
    $region11: #{tpu_custom_call.1} parent=1 // pred_check_branch
      %31 = sbr.rel (0) target = $region13
    $region12: #{tpu_custom_call.1} parent=1 // pred_region
      %32 = dma.done [#allocation3], 128
    $region13: #{tpu_custom_call.1} parent=1 // pred_fallthru
      _
    // Predicated region
    $region14: #{tpu_custom_call.1} parent=1 // pred_check
      _
    $region15: #{tpu_custom_call.1} parent=1 // pred_check_branch
      %34 = sbr.rel (0) target = $region17
    $region16: #{tpu_custom_call.1} parent=1 // pred_region
      %35 = dma.done [#allocation6], 128
    $region17: #{tpu_custom_call.1} parent=1 // pred_fallthru
      _
    %p36 = scmp.eq.s32.totalorder 0, 0
    %p37 = scmp.eq.s32.totalorder 0, 0
    %p38 = pnand %p36, %p37
    %p39 = pneg %p38
    // Predicated region
    $region18: #{tpu_custom_call.1} parent=1 // pred_check
      _
    $region19: #{tpu_custom_call.1} parent=1 // pred_check_branch
      %41 = sbr.rel (%p38) target = $region21
    $region20: #{tpu_custom_call.1} parent=1 // pred_region
      %42 = vst [vmem:[#allocation7] sm:$0xff] 0.0
      %43 = vst [vmem:[#allocation7 + $0x8] sm:$0xff] 0.0
      %44 = vst [vmem:[#allocation7 + $0x10] sm:$0xff] 0.0
    $region21: #{tpu_custom_call.1} parent=1 // pred_fallthru
      _
    %v45 = vld [vmem:[#allocation2] sm:$0xff]
    %v46 = vld [vmem:[#allocation5] sm:$0xff]
    %v47 = vmul.f32 %v45, 0.5
    %v48 = vtanh.pop %v47
    %v49 = vmul.f32 %v48, 0.5
    %v50 = vadd.f32 %v49, 0.5
    %v51 = vmul.f32 %v50, %v46
    %v52 = vmul.f32 %v46, %v46
    %v53 = vmul.f32 %v50, %v50
    %v54 = vadd.f32 %v51, 0.0
    %v55 = vadd.f32 %v52, 0.0
    %v56 = vadd.f32 %v53, 0.0
    %v57 = vld [vmem:[#allocation7] sm:$0xff]
    %v58 = vadd.f32 %v57, %v54
    %59 = vst [vmem:[#allocation7] sm:$0xff] %v58
    %s60 = scalar_lea.vmem [#allocation7], 8
    %v61 = vld [vmem:[%s60] sm:$0xff]
    %v62 = vadd.f32 %v61, %v55
    %63 = vst [vmem:[%s60] sm:$0xff] %v62
    %s64 = scalar_lea.vmem [#allocation7], 16
    %v65 = vld [vmem:[%s64] sm:$0xff]
    %v66 = vadd.f32 %v65, %v56
    %67 = vst [vmem:[%s64] sm:$0xff] %v66
    // Predicated region
    $region22: #{tpu_custom_call.1} parent=1 // pred_check
      _
    $region23: #{tpu_custom_call.1} parent=1 // pred_check_branch
      %69 = sbr.rel (0) target = $region25
    $region24: #{tpu_custom_call.1} parent=1 // pred_region
      %s71 = ssub.s32 384, 384
      %72 = vsyncadd [#allocation4], %s71
      %s73 = sshll.u32 [#allocation7], 4
      %s74 = int_to_ptr.vmem [resolvable:$true] %s73
      %79 = dma.vmem_to_hbm [thread:$0]  %s74, 384, %s2, [#allocation4], 128, 128, 8
    $region25: #{tpu_custom_call.1} parent=1 // pred_fallthru
      _
    // Predicated region
    $region26: #{tpu_custom_call.1} parent=1 // pred_check
      _
    $region27: #{tpu_custom_call.1} parent=1 // pred_check_branch
      %81 = sbr.rel (0) target = $region29
    $region28: #{tpu_custom_call.1} parent=1 // pred_region
      %82 = dma.done [#allocation4], 384
    $region29: #{tpu_custom_call.1} parent=1 // pred_fallthru
      _
    %83 = vsyncpa [#allocation3], 1
    %84 = vsyncpa [#allocation6], 1
    %85 = vsyncpa [#allocation4], 1

</llo_original>
